<compile_context>
chip_gen: v6e
topology: v6e:2x2x1
jax: 0.10.0
libtpu: 0.0.40
codegen_flags: <defaults>
</compile_context>

<pallas_src>
import functools
import math

import jax
import jax.numpy as jnp
from jax.experimental import pallas as pl
from jax.experimental.pallas import tpu as pltpu


def _da_kernel(x_ref, w_ref, b_ref, o1_ref, o2_ref, rhs_ref, *,
               H, Wpad, Cin, Cout, BB):
    """One grid step = BB images: fused dual-model 3x3 conv + disagreement attention.

    x_ref  : [BB, Cin, Lp]     bf16  padded images flattened row-major, Lp=(H+3)*Wpad
    w_ref  : [2*Cout, 9*Cin]   bf16  merged tap-major weights (rows = model1 | model2)
    b_ref  : [2*Cout, 1]       f32   merged biases
    o1/o2  : [BB, Cout, Lout]  f32   Lout = H*Wpad; columns >= W of each row are junk
    rhs_ref: [9*Cin, BB*Lout]  bf16  VMEM scratch: stacked lane-shifted tap views
    """
    Lout = H * Wpad

    # Build the stacked RHS: in a row-major padded image, tap (dh, dw) is a constant
    # flat lane offset dh*Wpad + dw, so each tap is just a lane-shifted view.
    for b in range(BB):
        xb = x_ref[b]                                           # [Cin, Lp] bf16
        for t in range(9):
            off = (t // 3) * Wpad + (t % 3)
            rhs_ref[t * Cin:(t + 1) * Cin, b * Lout:(b + 1) * Lout] = (
                xb[:, off:off + Lout])

    # Single bf16 MXU pass for both models and all 9 taps (K = 9*Cin), f32 accumulate.
    acc = jnp.dot(w_ref[...], rhs_ref[...], preferred_element_type=jnp.float32)
    f = jnp.maximum(acc + b_ref[...], 0.0)                      # [2*Cout, BB*Lout]

    # Disagreement attention fused full-width: swap the model halves on the XLU,
    # then one sigmoid / multiply stream covers both models.
    f_sw = pltpu.roll(f, shift=Cout, axis=0)                    # rows become [f2 | f1]
    out = f * jax.nn.sigmoid(f * (f - f_sw))                    # rows are [f1*a1 | f2*a2]

    for b in range(BB):
        o1_ref[b] = out[:Cout, b * Lout:(b + 1) * Lout].astype(o1_ref.dtype)
        o2_ref[b] = out[Cout:, b * Lout:(b + 1) * Lout].astype(o2_ref.dtype)


def _step_vmem_bytes(bb, Cin, Cout, Lp, Lout):
    """Per-grid-step VMEM working set (pipeline buffers double-buffered)."""
    x_in = bb * Cin * Lp * 2                       # bf16 input block
    outs = 2 * bb * Cout * Lout * 4                # two f32 output blocks
    wgt = 2 * Cout * 9 * Cin * 2 + 2 * Cout * 4    # merged weights + bias
    rhs = 9 * Cin * bb * Lout * 2                  # bf16 RHS scratch (single buffer)
    return 2 * (x_in + outs + wgt) + rhs


@functools.partial(jax.jit, static_argnames=("batch_block",))
def da_train_forward(x_nchw, w1, b1, w2, b2, *, batch_block=None):
    """x: [N,Cin,H,W] f32; w*: [Cout,Cin,3,3] (torch conv layout); b*: [Cout].

    Returns (out1, out2), each [N, Cout, H, W] float32 (NCHW, like PyTorch).
    Contract: x and the conv weights are routed through the MXU as bf16 (f32 accum).
    """
    N, Cin, H, W = x_nchw.shape
    Cout = w1.shape[0]

    # Lane-align the flattened output: pick padded width so H*Wpad % 128 == 0 (all
    # output stores become unmasked, lane-dense vst).  Fall back to the minimal pad
    # if alignment would more than double the row width.
    q = 128 // math.gcd(H, 128)
    Wpad = ((W + 2 + q - 1) // q) * q
    if Wpad > 2 * (W + 2):
        Wpad = W + 2
    Hp = H + 3                  # 1 top + 2 bottom rows of zeros: every tap-shifted
    Lp = Hp * Wpad              # window of length Lout stays in-bounds
    Lout = H * Wpad             # one output column per padded column; cols >= W junk

    # Batch chunk per grid step: keep grid length >= 2 when possible so both v7x
    # TensorCores get work; on single-TC v5e/v6e the extra step costs ~0.35 us.
    # Callers on single-TC chips can pass batch_block=N for a single step.
    if batch_block is None:
        batch_block = N // 2 if (N >= 2 and N % 2 == 0) else N
    BB = batch_block
    # Keep the per-step working set comfortably inside v7x's 64 MiB physical VMEM.
    budget = 40 << 20
    while BB > 1 and (N % BB != 0 or _step_vmem_bytes(BB, Cin, Cout, Lp, Lout) > budget):
        BB = max(d for d in range(1, BB) if N % d == 0)
    assert N % BB == 0
    step_bytes = _step_vmem_bytes(BB, Cin, Cout, Lp, Lout)
    vmem_limit = int(min(64 << 20, max(8 << 20, 2 * step_bytes)))

    # Zero-pad + cast to bf16 (fuses into one XLA op); contiguous reshape is free.
    xp = jnp.pad(x_nchw, ((0, 0), (0, 0), (1, 2), (1, Wpad - W - 1))).astype(jnp.bfloat16)
    xflat = xp.reshape(N, Cin, Lp)

    # Merge both models into one tap-major weight [2*Cout, 9*Cin] (K = tap*Cin + cin)
    # and bias [2*Cout, 1]; weights are fed to the MXU in bf16.
    def taps(w):                                        # [Cout,Cin,3,3] -> [9,Cout,Cin]
        return jnp.transpose(w, (2, 3, 0, 1)).reshape(9, Cout, Cin)
    wt = jnp.concatenate([taps(w1), taps(w2)], axis=1)          # [9, 2*Cout, Cin]
    wt = jnp.transpose(wt, (1, 0, 2)).reshape(2 * Cout, 9 * Cin).astype(jnp.bfloat16)
    bt = jnp.concatenate([b1, b2]).reshape(2 * Cout, 1).astype(jnp.float32)

    kernel = functools.partial(_da_kernel, H=H, Wpad=Wpad, Cin=Cin, Cout=Cout, BB=BB)
    o1, o2 = pl.pallas_call(
        kernel,
        out_shape=(
            jax.ShapeDtypeStruct((N, Cout, Lout), jnp.float32),
            jax.ShapeDtypeStruct((N, Cout, Lout), jnp.float32),
        ),
        grid_spec=pltpu.PrefetchScalarGridSpec(
            num_scalar_prefetch=0,
            grid=(N // BB,),
            in_specs=[
                pl.BlockSpec((BB, Cin, Lp), lambda n: (n, 0, 0)),      # padded images
                pl.BlockSpec((2 * Cout, 9 * Cin), lambda n: (0, 0)),   # merged weights
                pl.BlockSpec((2 * Cout, 1), lambda n: (0, 0)),         # merged bias
            ],
            out_specs=[
                pl.BlockSpec((BB, Cout, Lout), lambda n: (n, 0, 0)),
                pl.BlockSpec((BB, Cout, Lout), lambda n: (n, 0, 0)),
            ],
            scratch_shapes=[pltpu.VMEM((9 * Cin, BB * Lout), jnp.bfloat16)],
        ),
        compiler_params=pltpu.CompilerParams(
            dimension_semantics=("parallel",),   # batch-chunk axis -> both TCs on v7x
            vmem_limit_bytes=vmem_limit,
        ),
    )(xflat, wt, bt)

    # Output is already channels-first; reshape is free, then drop the junk columns.
    def finish(o):
        return o.reshape(N, Cout, H, Wpad)[:, :, :, :W]
    return finish(o1), finish(o2)


def _reference(x, w1, b1, w2, b2):
    """Pure-JAX reference (XLA conv) using the same bf16-rounded x / weights."""
    xc = x.astype(jnp.bfloat16).astype(jnp.float32)
    dn = ("NCHW", "OIHW", "NCHW")

    def conv(w):
        wc = w.astype(jnp.bfloat16).astype(jnp.float32)
        return jax.lax.conv_general_dilated(
            xc, wc, window_strides=(1, 1), padding="SAME",
            dimension_numbers=dn, precision=jax.lax.Precision.HIGHEST)

    f1 = jnp.maximum(conv(w1) + b1.reshape(1, -1, 1, 1), 0.0)
    f2 = jnp.maximum(conv(w2) + b2.reshape(1, -1, 1, 1), 0.0)
    d = f1 - f2
    return f1 * jax.nn.sigmoid(f1 * d), f2 * jax.nn.sigmoid(-f2 * d)


if __name__ == "__main__":
    # Small shapes consistent with the module: batch=2, channels=4, spatial=16.
    N, Cin, H, W = 2, 4, 16, 16
    Cout = 8

    key = jax.random.PRNGKey(0)
    kx, k1, k2, kb1, kb2 = jax.random.split(key, 5)

    x = jax.random.normal(kx, (N, Cin, H, W), dtype=jnp.float32)
    # Torch-layout conv weights [Cout, Cin, 3, 3] and biases [Cout] per model.
    w1 = jax.random.normal(k1, (Cout, Cin, 3, 3), dtype=jnp.float32) * 0.1
    w2 = jax.random.normal(k2, (Cout, Cin, 3, 3), dtype=jnp.float32) * 0.1
    b1 = jax.random.normal(kb1, (Cout,), dtype=jnp.float32) * 0.01
    b2 = jax.random.normal(kb2, (Cout,), dtype=jnp.float32) * 0.01

    out1, out2 = da_train_forward(x, w1, b1, w2, b2)
    jax.block_until_ready((out1, out2))

    ref1, ref2 = _reference(x, w1, b1, w2, b2)
    assert out1.shape == (N, Cout, H, W) and out2.shape == (N, Cout, H, W)
    # x and weights go through the MXU as bf16 (bandwidth/throughput optimization),
    # so compare against a reference rounded the same way; remaining diff is only
    # f32 accumulation order.
    assert jnp.allclose(out1, ref1, atol=1e-3, rtol=1e-3)
    assert jnp.allclose(out2, ref2, atol=1e-3, rtol=1e-3)

    print("KERNEL_OK")
</pallas_src>

<mosaic_0001>
module attributes {stable_mosaic.version = 11 : i64} {
  func.func @_da_kernel(%arg0: i32, %arg1: memref<1x4x456xbf16, #tpu.memory_space<vmem>>, %arg2: memref<16x36xbf16, #tpu.memory_space<vmem>>, %arg3: memref<16x1xf32, #tpu.memory_space<vmem>>, %arg4: memref<1x8x384xf32, #tpu.memory_space<vmem>>, %arg5: memref<1x8x384xf32, #tpu.memory_space<vmem>>, %arg6: memref<36x384xbf16, #tpu.memory_space<vmem>>) attributes {dimension_semantics = [#tpu.dimension_semantics<parallel>], iteration_bounds = array<i64: 2>, scalar_prefetch = 0 : i64, scratch_operands = 1 : i64, tpu.core_type = #tpu.core_type<tc>, window_params = [{transform_indices = @transform_0, window_bounds = array<i64: 1, 4, 456>}, {pipeline_mode = #tpu.pipeline_mode<synchronous>, transform_indices = @transform_1, window_bounds = array<i64: 16, 36>}, {pipeline_mode = #tpu.pipeline_mode<synchronous>, transform_indices = @transform_2, window_bounds = array<i64: 16, 1>}, {transform_indices = @transform_3, window_bounds = array<i64: 1, 8, 384>}, {transform_indices = @transform_4, window_bounds = array<i64: 1, 8, 384>}]} {
    %c0 = arith.constant 0 : index
    %c0_0 = arith.constant 0 : index
    %c0_1 = arith.constant 0 : index
    %0 = vector.load %arg1[%c0, %c0_0, %c0_1] : memref<1x4x456xbf16, #tpu.memory_space<vmem>>, vector<1x4x456xbf16>
    %1 = vector.shape_cast %0 : vector<1x4x456xbf16> to vector<4x456xbf16>
    %2 = vector.extract_strided_slice %1 {offsets = [0, 0], sizes = [4, 384], strides = [1, 1]} : vector<4x456xbf16> to vector<4x384xbf16>
    %c0_2 = arith.constant 0 : index
    %c0_3 = arith.constant 0 : index
    %3 = vector.load %arg6[%c0_2, %c0_3] : memref<36x384xbf16, #tpu.memory_space<vmem>>, vector<4x384xbf16>
    tpu.vector_store %arg6[%c0_2, %c0_3], %2 {strides = array<i32>} : memref<36x384xbf16, #tpu.memory_space<vmem>>, vector<4x384xbf16>,
    %4 = vector.extract_strided_slice %1 {offsets = [0, 1], sizes = [4, 384], strides = [1, 1]} : vector<4x456xbf16> to vector<4x384xbf16>
    %c4 = arith.constant 4 : index
    %c0_4 = arith.constant 0 : index
    %5 = vector.load %arg6[%c4, %c0_4] : memref<36x384xbf16, #tpu.memory_space<vmem>>, vector<4x384xbf16>
    tpu.vector_store %arg6[%c4, %c0_4], %4 {strides = array<i32>} : memref<36x384xbf16, #tpu.memory_space<vmem>>, vector<4x384xbf16>,
    %6 = vector.extract_strided_slice %1 {offsets = [0, 2], sizes = [4, 384], strides = [1, 1]} : vector<4x456xbf16> to vector<4x384xbf16>
    %c8 = arith.constant 8 : index
    %c0_5 = arith.constant 0 : index
    %7 = vector.load %arg6[%c8, %c0_5] : memref<36x384xbf16, #tpu.memory_space<vmem>>, vector<4x384xbf16>
    tpu.vector_store %arg6[%c8, %c0_5], %6 {strides = array<i32>} : memref<36x384xbf16, #tpu.memory_space<vmem>>, vector<4x384xbf16>,
    %8 = vector.extract_strided_slice %1 {offsets = [0, 24], sizes = [4, 384], strides = [1, 1]} : vector<4x456xbf16> to vector<4x384xbf16>
    %c12 = arith.constant 12 : index
    %c0_6 = arith.constant 0 : index
    %9 = vector.load %arg6[%c12, %c0_6] : memref<36x384xbf16, #tpu.memory_space<vmem>>, vector<4x384xbf16>
    tpu.vector_store %arg6[%c12, %c0_6], %8 {strides = array<i32>} : memref<36x384xbf16, #tpu.memory_space<vmem>>, vector<4x384xbf16>,
    %10 = vector.extract_strided_slice %1 {offsets = [0, 25], sizes = [4, 384], strides = [1, 1]} : vector<4x456xbf16> to vector<4x384xbf16>
    %c16 = arith.constant 16 : index
    %c0_7 = arith.constant 0 : index
    %11 = vector.load %arg6[%c16, %c0_7] : memref<36x384xbf16, #tpu.memory_space<vmem>>, vector<4x384xbf16>
    tpu.vector_store %arg6[%c16, %c0_7], %10 {strides = array<i32>} : memref<36x384xbf16, #tpu.memory_space<vmem>>, vector<4x384xbf16>,
    %12 = vector.extract_strided_slice %1 {offsets = [0, 26], sizes = [4, 384], strides = [1, 1]} : vector<4x456xbf16> to vector<4x384xbf16>
    %c20 = arith.constant 20 : index
    %c0_8 = arith.constant 0 : index
    %13 = vector.load %arg6[%c20, %c0_8] : memref<36x384xbf16, #tpu.memory_space<vmem>>, vector<4x384xbf16>
    tpu.vector_store %arg6[%c20, %c0_8], %12 {strides = array<i32>} : memref<36x384xbf16, #tpu.memory_space<vmem>>, vector<4x384xbf16>,
    %14 = vector.extract_strided_slice %1 {offsets = [0, 48], sizes = [4, 384], strides = [1, 1]} : vector<4x456xbf16> to vector<4x384xbf16>
    %c24 = arith.constant 24 : index
    %c0_9 = arith.constant 0 : index
    %15 = vector.load %arg6[%c24, %c0_9] : memref<36x384xbf16, #tpu.memory_space<vmem>>, vector<4x384xbf16>
    tpu.vector_store %arg6[%c24, %c0_9], %14 {strides = array<i32>} : memref<36x384xbf16, #tpu.memory_space<vmem>>, vector<4x384xbf16>,
    %16 = vector.extract_strided_slice %1 {offsets = [0, 49], sizes = [4, 384], strides = [1, 1]} : vector<4x456xbf16> to vector<4x384xbf16>
    %c28 = arith.constant 28 : index
    %c0_10 = arith.constant 0 : index
    %17 = vector.load %arg6[%c28, %c0_10] : memref<36x384xbf16, #tpu.memory_space<vmem>>, vector<4x384xbf16>
    tpu.vector_store %arg6[%c28, %c0_10], %16 {strides = array<i32>} : memref<36x384xbf16, #tpu.memory_space<vmem>>, vector<4x384xbf16>,
    %18 = vector.extract_strided_slice %1 {offsets = [0, 50], sizes = [4, 384], strides = [1, 1]} : vector<4x456xbf16> to vector<4x384xbf16>
    %c32 = arith.constant 32 : index
    %c0_11 = arith.constant 0 : index
    %19 = vector.load %arg6[%c32, %c0_11] : memref<36x384xbf16, #tpu.memory_space<vmem>>, vector<4x384xbf16>
    tpu.vector_store %arg6[%c32, %c0_11], %18 {strides = array<i32>} : memref<36x384xbf16, #tpu.memory_space<vmem>>, vector<4x384xbf16>,
    %c0_12 = arith.constant 0 : index
    %c0_13 = arith.constant 0 : index
    %20 = vector.load %arg2[%c0_12, %c0_13] : memref<16x36xbf16, #tpu.memory_space<vmem>>, vector<16x36xbf16>
    %c0_14 = arith.constant 0 : index
    %c0_15 = arith.constant 0 : index
    %21 = vector.load %arg6[%c0_14, %c0_15] : memref<36x384xbf16, #tpu.memory_space<vmem>>, vector<36x384xbf16>
    %cst = arith.constant dense<0.000000e+00> : vector<16x384xf32>
    %22 = tpu.matmul %20, %21, %cst {dimension_numbers = #tpu.dot_dimension_numbers<[1], [0], [0], [1], [0, 0, 1, 1], [], []>} : vector<16x36xbf16>, vector<36x384xbf16>, vector<16x384xf32> -> vector<16x384xf32>
    %c0_16 = arith.constant 0 : index
    %c0_17 = arith.constant 0 : index
    %23 = vector.load %arg3[%c0_16, %c0_17] : memref<16x1xf32, #tpu.memory_space<vmem>>, vector<16x1xf32>
    %24 = vector.broadcast %23 : vector<16x1xf32> to vector<16x384xf32>
    %25 = arith.addf %22, %24 : vector<16x384xf32>
    %cst_18 = arith.constant 0.000000e+00 : f32
    %26 = vector.broadcast %cst_18 : f32 to vector<16x384xf32>
    %27 = arith.maximumf %25, %26 : vector<16x384xf32>
    %c8_i32 = arith.constant 8 : i32
    %28 = tpu.dynamic_rotate %27 by %c8_i32 dim 0 : vector<16x384xf32>, i32 -> vector<16x384xf32>
    %29 = arith.subf %27, %28 : vector<16x384xf32>
    %30 = arith.mulf %27, %29 : vector<16x384xf32>
    %31 = arith.negf %30 : vector<16x384xf32>
    %32 = math.exp %31 : vector<16x384xf32>
    %cst_19 = arith.constant 1.000000e+00 : f32
    %33 = vector.broadcast %cst_19 : f32 to vector<16x384xf32>
    %34 = arith.addf %33, %32 : vector<16x384xf32>
    %35 = arith.divf %33, %34 : vector<16x384xf32>
    %36 = arith.mulf %27, %35 : vector<16x384xf32>
    %37 = vector.extract_strided_slice %36 {offsets = [0, 0], sizes = [8, 384], strides = [1, 1]} : vector<16x384xf32> to vector<8x384xf32>
    %c0_20 = arith.constant 0 : index
    %c0_21 = arith.constant 0 : index
    %c0_22 = arith.constant 0 : index
    %38 = vector.load %arg4[%c0_20, %c0_21, %c0_22] : memref<1x8x384xf32, #tpu.memory_space<vmem>>, vector<1x8x384xf32>
    %39 = vector.shape_cast %38 : vector<1x8x384xf32> to vector<8x384xf32>
    %40 = vector.shape_cast %37 : vector<8x384xf32> to vector<1x8x384xf32>
    tpu.vector_store %arg4[%c0_20, %c0_21, %c0_22], %40 {strides = array<i32>} : memref<1x8x384xf32, #tpu.memory_space<vmem>>, vector<1x8x384xf32>,
    %41 = vector.extract_strided_slice %36 {offsets = [8, 0], sizes = [8, 384], strides = [1, 1]} : vector<16x384xf32> to vector<8x384xf32>
    %c0_23 = arith.constant 0 : index
    %c0_24 = arith.constant 0 : index
    %c0_25 = arith.constant 0 : index
    %42 = vector.load %arg5[%c0_23, %c0_24, %c0_25] : memref<1x8x384xf32, #tpu.memory_space<vmem>>, vector<1x8x384xf32>
    %43 = vector.shape_cast %42 : vector<1x8x384xf32> to vector<8x384xf32>
    %44 = vector.shape_cast %41 : vector<8x384xf32> to vector<1x8x384xf32>
    tpu.vector_store %arg5[%c0_23, %c0_24, %c0_25], %44 {strides = array<i32>} : memref<1x8x384xf32, #tpu.memory_space<vmem>>, vector<1x8x384xf32>,
    return
  }
  func.func @transform_0(%arg0: i32) -> (i32, i32, i32) {
    %c0_i32 = arith.constant 0 : i32
    %c0_i32_0 = arith.constant 0 : i32
    %c0_i32_1 = arith.constant 0 : i32
    return %arg0, %c0_i32, %c0_i32_0 : i32, i32, i32
  }
  func.func @transform_1(%arg0: i32) -> (i32, i32) {
    %c0_i32 = arith.constant 0 : i32
    %c0_i32_0 = arith.constant 0 : i32
    %c0_i32_1 = arith.constant 0 : i32
    return %c0_i32, %c0_i32_0 : i32, i32
  }
  func.func @transform_2(%arg0: i32) -> (i32, i32) {
    %c0_i32 = arith.constant 0 : i32
    %c0_i32_0 = arith.constant 0 : i32
    %c0_i32_1 = arith.constant 0 : i32
    return %c0_i32, %c0_i32_0 : i32, i32
  }
  func.func @transform_3(%arg0: i32) -> (i32, i32, i32) {
    %c0_i32 = arith.constant 0 : i32
    %c0_i32_0 = arith.constant 0 : i32
    %c0_i32_1 = arith.constant 0 : i32
    return %arg0, %c0_i32, %c0_i32_0 : i32, i32, i32
  }
  func.func @transform_4(%arg0: i32) -> (i32, i32, i32) {
    %c0_i32 = arith.constant 0 : i32
    %c0_i32_0 = arith.constant 0 : i32
    %c0_i32_1 = arith.constant 0 : i32
    return %arg0, %c0_i32, %c0_i32_0 : i32, i32, i32
  }
}

</mosaic_0001>

<llo_original>
// kernel: da_train_forward.1
$region0: #{da_train_forward.1}
  #allocation0 [shape = 'u32[]', space=smem, size = 0x4, offset = 0x4, fixed_abs, tag = 'smem constant byte address 0x4 - core index']
  #allocation1 [shape = 'u32[144,128]{1,0:T(1,128)}', space=vmem, size = 0x12000, scoped, tag = 'internal scratch']
  #allocation2 [shape = 'bf16[36,384]{1,0:T(8,128)(2,1)}', space=vmem, size = 0x7800, scoped, tag = 'scratch operand']
  %s0 = inlined_call_operand.vmem [shape: bf16[2,4,456], index: 0, kind: input, shape index: {}]
  %s1 = inlined_call_operand.vmem [shape: bf16[16,36], index: 1, kind: input, shape index: {}]
  %s2 = inlined_call_operand.vmem [shape: f32[16,1], index: 2, kind: input, shape index: {}]
  %s3 = inlined_call_operand.vmem [shape: f32[2,8,384], index: 3, kind: output, shape index: {0}]
  %s4 = inlined_call_operand.vmem [shape: f32[2,8,384], index: 4, kind: output, shape index: {1}]
  %5 = xla_tuple %s3, %s4
  %s6 = sld [smem:[#allocation0]]
  $region53: #{da_train_forward.1} parent=0
    _
  %s8 = ssub.s32 1, %s6
  %s9 = scalar_select 0, %s8, %s6
  loop: start=0, step=1, limit=4
  $region2: #{da_train_forward.1} parent=0 // loop_pre_header
    _
  $region3: #{da_train_forward.1} parent=0 // loop_header
    %s11 = sphi 0, %s15
    %p12 = scmp.ge.s32.totalorder %s11, 4
    %s21 = sphi 0, %s23
    %s24 = sphi 0, %s21
    %s25 = sphi 0, %s24
    %s41 = sphi 0, %s25
    %s45 = sphi 0, %s45
    %s47 = sphi 0, %s45
    %s48 = sphi 0, %s47
    %s62 = sphi 0, %s48
    %s66 = sphi 0, %s66
    %s68 = sphi 0, %s66
    %s69 = sphi 0, %s68
    %s83 = sphi 0, %s69
    %s89 = sphi 0, %s91
    %s92 = sphi 0, %s89
    %s93 = sphi 0, %s92
    %s109 = sphi 0, %s93
    %s115 = sphi 0, %s117
    %s118 = sphi 0, %s115
    %s119 = sphi 0, %s118
    %s135 = sphi 0, %s119
  $region4: #{da_train_forward.1} parent=0 // loop_header_branch
    %14 = sbr.rel (%p12) target = $region8
  $region5: #{da_train_forward.1} parent=0 // loop_body
    %s16 = ssub.s32 %s11, 1
    %s17 = ssub.s32 %s11, 2
    %s18 = sadd.s32 %s11, 1
    %s19 = ssub.s32 %s11, %s18
    %p20 = scmp.eq.s32.totalorder %s19, 0
    %s22 = sadd.s32 %s21, 1
    %s23 = scalar_select %p20, %s21, %s22
    %p26 = pneg %p20
    %p27 = scmp.eq.s32.totalorder %s11, 1
    %p28 = por %p26, %p27
    %p29 = scmp.ne.s32.totalorder %s21, %s24
    %p30 = scmp.eq.s32.totalorder %s11, 0
    %p31 = por %p29, %p30
    %p32 = scmp.ne.s32.totalorder %s21, %s24
    %p33 = scmp.eq.s32.totalorder %s16, 1
    %p34 = por %p32, %p33
    %p35 = scmp.ne.s32.totalorder %s24, %s25
    %p36 = scmp.eq.s32.totalorder %s16, 0
    %p37 = por %p35, %p36
    %p38 = scmp.ne.s32.totalorder %s24, %s25
    %p39 = scmp.eq.s32.totalorder %s17, 1
    %p40 = por %p38, %p39
    %p42 = scmp.ne.s32.totalorder %s25, %s41
    %p43 = scmp.eq.s32.totalorder %s17, 0
    %p44 = por %p42, %p43
    %s46 = sadd.s32 %s45, 1
    %p49 = scmp.eq.s32.totalorder %s11, 1
    %p50 = scmp.ne.s32.totalorder %s45, %s47
    %p51 = scmp.eq.s32.totalorder %s11, 0
    %p52 = por %p50, %p51
    %p53 = scmp.ne.s32.totalorder %s45, %s47
    %p54 = scmp.eq.s32.totalorder %s16, 1
    %p55 = por %p53, %p54
    %p56 = scmp.ne.s32.totalorder %s47, %s48
    %p57 = scmp.eq.s32.totalorder %s16, 0
    %p58 = por %p56, %p57
    %p59 = scmp.ne.s32.totalorder %s47, %s48
    %p60 = scmp.eq.s32.totalorder %s17, 1
    %p61 = por %p59, %p60
    %p63 = scmp.ne.s32.totalorder %s48, %s62
    %p64 = scmp.eq.s32.totalorder %s17, 0
    %p65 = por %p63, %p64
    %s67 = sadd.s32 %s66, 1
    %p70 = scmp.eq.s32.totalorder %s11, 1
    %p71 = scmp.ne.s32.totalorder %s66, %s68
    %p72 = scmp.eq.s32.totalorder %s11, 0
    %p73 = por %p71, %p72
    %p74 = scmp.ne.s32.totalorder %s66, %s68
    %p75 = scmp.eq.s32.totalorder %s16, 1
    %p76 = por %p74, %p75
    %p77 = scmp.ne.s32.totalorder %s68, %s69
    %p78 = scmp.eq.s32.totalorder %s16, 0
    %p79 = por %p77, %p78
    %p80 = scmp.ne.s32.totalorder %s68, %s69
    %p81 = scmp.eq.s32.totalorder %s17, 1
    %p82 = por %p80, %p81
    %p84 = scmp.ne.s32.totalorder %s69, %s83
    %p85 = scmp.eq.s32.totalorder %s17, 0
    %p86 = por %p84, %p85
    %s87 = ssub.s32 %s11, %s18
    %p88 = scmp.eq.s32.totalorder %s87, 0
    %s90 = sadd.s32 %s89, 1
    %s91 = scalar_select %p88, %s89, %s90
    %p94 = pneg %p88
    %p95 = scmp.eq.s32.totalorder %s11, 1
    %p96 = por %p94, %p95
    %p97 = scmp.ne.s32.totalorder %s89, %s92
    %p98 = scmp.eq.s32.totalorder %s11, 0
    %p99 = por %p97, %p98
    %p100 = scmp.ne.s32.totalorder %s89, %s92
    %p101 = scmp.eq.s32.totalorder %s16, 1
    %p102 = por %p100, %p101
    %p103 = scmp.ne.s32.totalorder %s92, %s93
    %p104 = scmp.eq.s32.totalorder %s16, 0
    %p105 = por %p103, %p104
    %p106 = scmp.ne.s32.totalorder %s92, %s93
    %p107 = scmp.eq.s32.totalorder %s17, 1
    %p108 = por %p106, %p107
    %p110 = scmp.ne.s32.totalorder %s93, %s109
    %p111 = scmp.eq.s32.totalorder %s17, 0
    %p112 = por %p110, %p111
    %s113 = ssub.s32 %s11, %s18
    %p114 = scmp.eq.s32.totalorder %s113, 0
    %s116 = sadd.s32 %s115, 1
    %s117 = scalar_select %p114, %s115, %s116
    %p120 = pneg %p114
    %p121 = scmp.eq.s32.totalorder %s11, 1
    %p122 = por %p120, %p121
    %p123 = scmp.ne.s32.totalorder %s115, %s118
    %p124 = scmp.eq.s32.totalorder %s11, 0
    %p125 = por %p123, %p124
    %p126 = scmp.ne.s32.totalorder %s115, %s118
    %p127 = scmp.eq.s32.totalorder %s16, 1
    %p128 = por %p126, %p127
    %p129 = scmp.ne.s32.totalorder %s118, %s119
    %p130 = scmp.eq.s32.totalorder %s16, 0
    %p131 = por %p129, %p130
    %p132 = scmp.ne.s32.totalorder %s118, %s119
    %p133 = scmp.eq.s32.totalorder %s17, 1
    %p134 = por %p132, %p133
    %p136 = scmp.ne.s32.totalorder %s119, %s135
    %p137 = scmp.eq.s32.totalorder %s17, 0
    %p138 = por %p136, %p137
    %p139 = scmp.le.s32.totalorder 1, %s11
    %p140 = scmp.lt.s32.totalorder %s11, 3
    %p141 = pnand %p139, %p140
    %p142 = pneg %p141
    // Predicated region
    $region9: #{da_train_forward.1} parent=5 // pred_check
      _
    $region10: #{da_train_forward.1} parent=5 // pred_check_branch
      %144 = sbr.rel (%p141) target = $region12
    $region11: #{da_train_forward.1} parent=5 // pred_region
      %s145 = ssub.s32 %s11, 1
      // Predicated region
      $region13: #{da_train_forward.1} parent=11 // pred_check
        %p146 = pneg %p58
      $region14: #{da_train_forward.1} parent=11 // pred_check_branch
        %148 = sbr.rel (%p146) target = $region16
      $region15: #{da_train_forward.1} parent=11 // pred_region
        _
      $region16: #{da_train_forward.1} parent=11 // pred_fallthru
        _
      // Predicated region
      $region17: #{da_train_forward.1} parent=11 // pred_check
        %p149 = pneg %p79
      $region18: #{da_train_forward.1} parent=11 // pred_check_branch
        %151 = sbr.rel (%p149) target = $region20
      $region19: #{da_train_forward.1} parent=11 // pred_region
        _
      $region20: #{da_train_forward.1} parent=11 // pred_fallthru
        _
    $region12: #{da_train_forward.1} parent=5 // pred_fallthru
      _
    %p152 = scmp.lt.s32.totalorder %s11, 2
    // Predicated region
    $region21: #{da_train_forward.1} parent=5 // pred_check
      %p153 = pneg %p152
    $region22: #{da_train_forward.1} parent=5 // pred_check_branch
      %155 = sbr.rel (%p153) target = $region24
    $region23: #{da_train_forward.1} parent=5 // pred_region
      // Predicated region
      $region25: #{da_train_forward.1} parent=23 // pred_check
        %p156 = pneg %p31
      $region26: #{da_train_forward.1} parent=23 // pred_check_branch
        %158 = sbr.rel (%p156) target = $region28
      $region27: #{da_train_forward.1} parent=23 // pred_region
        %p159 = scmp.lt.s32.totalorder %s11, 1
        %s160 = scalar_select %p159, %s11, 1
        %s161 = smul.addr %s160, 4
        %s162 = smul.addr %s161, 2
        %s163 = scalar_lea.vmem %s0, %s162
      $region28: #{da_train_forward.1} parent=23 // pred_fallthru
        _
    $region24: #{da_train_forward.1} parent=5 // pred_fallthru
      _
    %p164 = scmp.le.s32.totalorder 1, %s11
    %p165 = scmp.lt.s32.totalorder %s11, 3
    %p166 = pnand %p164, %p165
    %p167 = pneg %p166
    // Predicated region
    $region29: #{da_train_forward.1} parent=5 // pred_check
      _
    $region30: #{da_train_forward.1} parent=5 // pred_check_branch
      %169 = sbr.rel (%p166) target = $region32
    $region31: #{da_train_forward.1} parent=5 // pred_region
      %s170 = ssub.s32 %s11, 1
      %p171 = scmp.lt.s32.totalorder %s16, 1
      %s172 = scalar_select %p171, %s16, 1
      %s173 = smul.addr %s172, 4
      %s174 = smul.addr %s173, 2
      %s175 = scalar_lea.vmem %s0, %s174
      %p176 = pneg %p37
      %p177 = pneg %p34
      %p178 = pneg %p58
      %p179 = pneg %p55
      %p180 = pneg %p79
      %p181 = pneg %p76
      %p182 = pneg %p105
      %p183 = pneg %p102
      %p184 = scmp.lt.s32.totalorder %s16, 1
      %s185 = scalar_select %p184, %s16, 1
      %s186 = smul.addr %s185, 3
      %s187 = smul.addr %s186, 8
      %s188 = scalar_lea.vmem %s3, %s187
      %p189 = pneg %p131
      %p190 = pneg %p128
      %p191 = scmp.lt.s32.totalorder %s16, 1
      %s192 = scalar_select %p191, %s16, 1
      %s193 = smul.addr %s192, 3
      %s194 = smul.addr %s193, 8
      %s195 = scalar_lea.vmem %s4, %s194
      %p196 = scmp.lt.s32.totalorder %s16, 1
      %s197 = scalar_select %p196, %s16, 1
      %s198 = smul.addr %s197, 4
      %s199 = smul.addr %s198, 2
      %s200 = scalar_lea.vmem %s0, %s199
      %p201 = scmp.lt.s32.totalorder %s16, 1
      %s202 = scalar_select %p201, %s16, 1
      %s203 = smul.addr %s202, 3
      %s204 = smul.addr %s203, 8
      %s205 = scalar_lea.vmem %s3, %s204
      %p206 = scmp.lt.s32.totalorder %s16, 1
      %s207 = scalar_select %p206, %s16, 1
      %s208 = smul.addr %s207, 3
      %s209 = smul.addr %s208, 8
      %s210 = scalar_lea.vmem %s4, %s209
      %v212 = vld [vmem:[%s200] sm:$0xff]
      %v214 = vcombine.high %v212, %v212
      %v216 = vunpack.c.l.s4 1983009808
      %v217 = vunpack.c.0.s8 %v216
      %v218 = vlaneseq
      %v219 = vshrl.u32 %v218, 7
      %v220 = vsub.s32 %v217, %v219
      %v221 = vrot.slane %v212, %v220
      %v223 = vunpack.c.l.s4 1983009808
      %v224 = vunpack.c.0.s8 %v223
      %v225 = vlaneseq
      %v226 = vshrl.u32 %v225, 7
      %v227 = vsub.s32 %v224, %v226
      %v228 = vrot.slane %v214, %v227
      %231 = vst [vmem:[#allocation2] sm:$0x33] %v221
      %232 = vst [vmem:[#allocation2 + $0x8] sm:$0x3] %v228
      %v233 = vcombine.low %v212, %v212
      %v235 = vunpack.c.l.s4 1983009808
      %v236 = vunpack.c.0.s8 %v235
      %v237 = vlaneseq
      %v238 = vshrl.u32 %v237, 7
      %v239 = vsub.s32 %v236, %v238
      %v240 = vrot.slane %v233, %v239
      %241 = vrot.lane.b32.xlu0 %v240, 127
      %v242 = vpop.permute.xlu0 %241
      %243 = vrot.lane.b32.xlu0 %v221, 127
      %v244 = vpop.permute.xlu0 %243
      %v245 = vrot.slane %v242, 4
      %v246 = vrot.slane %v244, 4
      %vm247 = vcmask 1043456
      %v248 = vsel %vm247, %v245, %v246
      %vm249 = vcmask 1039360
      %v250 = vsel %vm249, %v242, %v248
      %v251 = vsel %vm249, %v244, %v246
      %254 = vst [vmem:[#allocation2] sm:$0xcc] %v250
      %255 = vst [vmem:[#allocation2 + $0x8] sm:$0xc] %v251
      %256 = vrot.lane.b32.xlu0 %v221, 126
      %v257 = vpop.permute.xlu0 %256
      %258 = vrot.lane.b32.xlu0 %v228, 126
      %v259 = vpop.permute.xlu0 %258
      %v260 = vrot.slane %v257, 4
      %v261 = vrot.slane %v259, 4
      %v262 = vsel %vm247, %v260, %v261
      %vm263 = vcmask 1031168
      %v264 = vsel %vm263, %v257, %v262
      %v265 = vsel %vm263, %v259, %v261
      %268 = vst [vmem:[#allocation2 + $0xc] sm:$0x33] %v264
      %269 = vst [vmem:[#allocation2 + $0x14] sm:$0x3] %v265
      %270 = vrot.lane.b32.xlu0 %v240, 104
      %v271 = vpop.permute.xlu0 %270
      %272 = vrot.lane.b32.xlu0 %v221, 104
      %v273 = vpop.permute.xlu0 %272
      %v274 = vrot.slane %v271, 4
      %v275 = vrot.slane %v273, 4
      %v276 = vsel %vm247, %v274, %v275
      %vm277 = vcmask 850944
      %v278 = vsel %vm277, %v271, %v276
      %v279 = vsel %vm277, %v273, %v275
      %282 = vst [vmem:[#allocation2 + $0xc] sm:$0xcc] %v278
      %283 = vst [vmem:[#allocation2 + $0x14] sm:$0xc] %v279
      %284 = vrot.lane.b32.xlu0 %v221, 103
      %v285 = vpop.permute.xlu0 %284
      %286 = vrot.lane.b32.xlu0 %v228, 103
      %v287 = vpop.permute.xlu0 %286
      %v288 = vrot.slane %v285, 4
      %v289 = vrot.slane %v287, 4
      %v290 = vsel %vm247, %v288, %v289
      %vm291 = vcmask 842752
      %v292 = vsel %vm291, %v285, %v290
      %v293 = vsel %vm291, %v287, %v289
      %296 = vst [vmem:[#allocation2 + $0x18] sm:$0x33] %v292
      %297 = vst [vmem:[#allocation2 + $0x20] sm:$0x3] %v293
      %298 = vrot.lane.b32.xlu0 %v240, 102
      %v299 = vpop.permute.xlu0 %298
      %300 = vrot.lane.b32.xlu0 %v221, 102
      %v301 = vpop.permute.xlu0 %300
      %v302 = vrot.slane %v299, 4
      %v303 = vrot.slane %v301, 4
      %v304 = vsel %vm247, %v302, %v303
      %vm305 = vcmask 834560
      %v306 = vsel %vm305, %v299, %v304
      %v307 = vsel %vm305, %v301, %v303
      %310 = vst [vmem:[#allocation2 + $0x18] sm:$0xcc] %v306
      %311 = vst [vmem:[#allocation2 + $0x20] sm:$0xc] %v307
      %312 = vrot.lane.b32.xlu0 %v221, 80
      %v313 = vpop.permute.xlu0 %312
      %314 = vrot.lane.b32.xlu0 %v228, 80
      %v315 = vpop.permute.xlu0 %314
      %v316 = vrot.slane %v313, 4
      %v317 = vrot.slane %v315, 4
      %v318 = vsel %vm247, %v316, %v317
      %vm319 = vcmask 654336
      %v320 = vsel %vm319, %v313, %v318
      %v321 = vsel %vm319, %v315, %v317
      %324 = vst [vmem:[#allocation2 + $0x24] sm:$0x33] %v320
      %325 = vst [vmem:[#allocation2 + $0x2c] sm:$0x3] %v321
      %326 = vrot.lane.b32.xlu0 %v240, 79
      %v327 = vpop.permute.xlu0 %326
      %328 = vrot.lane.b32.xlu0 %v221, 79
      %v329 = vpop.permute.xlu0 %328
      %v330 = vrot.slane %v327, 4
      %v331 = vrot.slane %v329, 4
      %v332 = vsel %vm247, %v330, %v331
      %vm333 = vcmask 646144
      %v334 = vsel %vm333, %v327, %v332
      %v335 = vsel %vm333, %v329, %v331
      %338 = vst [vmem:[#allocation2 + $0x24] sm:$0xcc] %v334
      %339 = vst [vmem:[#allocation2 + $0x2c] sm:$0xc] %v335
      %340 = vrot.lane.b32.xlu0 %v221, 78
      %v341 = vpop.permute.xlu0 %340
      %342 = vrot.lane.b32.xlu0 %v228, 78
      %v343 = vpop.permute.xlu0 %342
      %v344 = vrot.slane %v341, 4
      %v345 = vrot.slane %v343, 4
      %v346 = vsel %vm247, %v344, %v345
      %vm347 = vcmask 637952
      %v348 = vsel %vm347, %v341, %v346
      %v349 = vsel %vm347, %v343, %v345
      %352 = vst [vmem:[#allocation2 + $0x30] sm:$0x33] %v348
      %353 = vst [vmem:[#allocation2 + $0x38] sm:$0x3] %v349
      %v354 = vld [vmem:[%s1] sm:$0xf]
      %v355 = vld [vmem:[%s1 + $0x4] sm:$0xf]
      %v356 = vld [vmem:[#allocation2] sm:$0xff]
      %v357 = vld [vmem:[#allocation2 + $0x8] sm:$0xf]
      %v358 = vld [vmem:[#allocation2 + $0xc] sm:$0xff]
      %v359 = vld [vmem:[#allocation2 + $0x14] sm:$0xf]
      %v360 = vld [vmem:[#allocation2 + $0x18] sm:$0xff]
      %v361 = vld [vmem:[#allocation2 + $0x20] sm:$0xf]
      %v362 = vld [vmem:[#allocation2 + $0x24] sm:$0xff]
      %v363 = vld [vmem:[#allocation2 + $0x2c] sm:$0xf]
      %v364 = vld [vmem:[#allocation2 + $0x30] sm:$0x33]
      %v365 = vld [vmem:[#allocation2 + $0x38] sm:$0x3]
      %v366 = vld [vmem:[%s2] sm:$0xff]
      %v367 = vld [vmem:[%s2 + $0x8] sm:$0xff]
      %369 = vset.pattern.permute.xlu0 0
      %370 = vperm.xlu0 %369, %v366
      %v371 = vpop.permute.xlu0 %370
      %374 = vset.pattern.permute.xlu0 0
      %375 = vperm.xlu0 %374, %v367
      %v376 = vpop.permute.xlu0 %375
      %v380 = vunpack.c.l.b16 %v354
      %v381 = vunpack.c.l.b16 %v355
      %v382 = vpack.c.b16 %v381, %v380
      %v393 = vunpack.c.l.b16 %v356
      %v394 = vunpack.c.h.b16 %v356
      %v395 = vunpack.c.l.b16 %v357
      %v396 = vunpack.c.l.b16 %v358
      %v397 = vunpack.c.h.b16 %v358
      %v398 = vunpack.c.l.b16 %v359
      %v399 = vunpack.c.l.b16 %v360
      %v400 = vunpack.c.h.b16 %v360
      %v401 = vunpack.c.l.b16 %v361
      %v402 = vunpack.c.l.b16 %v362
      %v403 = vunpack.c.h.b16 %v362
      %v404 = vunpack.c.l.b16 %v363
      %v405 = vunpack.c.l.b16 %v364
      %v406 = vunpack.c.h.b16 %v364
      %v407 = vunpack.c.l.b16 %v365
      %v408 = vpack.c.b16 %v396, %v393
      %v409 = vpack.c.b16 %v397, %v394
      %v410 = vpack.c.b16 %v398, %v395
      %v411 = vpack.c.b16 %v402, %v399
      %v412 = vpack.c.b16 %v403, %v400
      %v413 = vpack.c.b16 %v404, %v401
      %v414 = vpack.c.b16 %v405, %v405
      %v415 = vpack.c.b16 %v406, %v406
      %v416 = vpack.c.b16 %v407, %v407
      %vm423 = vcmask 293888
      %v425 = vsel %vm423, %v382, 0
      %vm427 = vcmask 1041408
      %v429 = vsel %vm427, %v414, 0
      %v432 = vsel %vm427, %v415, 0
      %v435 = vsel %vm427, %v416, 0
      %437 = vmatprep.subr.bf16.mxu0 0
      %438 = vmatpush1.bf16.msra.mxu0 0
      %439 = vmatprep.subr.bf16.mxu0 0
      %440 = vmatpush1.bf16.msra.mxu0 0
      %441 = vmatprep.subr.bf16.mxu0 0
      %442 = vmatpush1.bf16.msra.mxu0 0
      %443 = vmatprep.subr.bf16.mxu0 0
      %444 = vmatpush1.bf16.msra.mxu0 0
      %445 = vmatprep.subr.bf16.mxu0 0
      %446 = vmatpush1.bf16.msra.mxu0 0
      %447 = vmatprep.subr.bf16.mxu0 %v432
      %448 = vmatpush1.bf16.msra.mxu0 %v429
      %449 = vmatprep.subr.bf16.mxu0 %v412
      %450 = vmatpush1.bf16.msra.mxu0 %v411
      %451 = vmatprep.subr.bf16.mxu0 %v409
      %452 = vmatpush1.bf16.msra.mxu0 %v408
      %453 = vmatprep.subr.bf16.mxu0 0
      %454 = vmatpush2.bf16.msra.mxu0 0
      %455 = vmatprep.subr.bf16.mxu0 0
      %456 = vmatpush2.bf16.msra.mxu0 0
      %457 = vmatprep.subr.bf16.mxu0 0
      %458 = vmatpush2.bf16.msra.mxu0 0
      %459 = vmatprep.subr.bf16.mxu0 0
      %460 = vmatpush2.bf16.msra.mxu0 0
      %461 = vmatprep.subr.bf16.mxu0 0
      %462 = vmatpush2.bf16.msra.mxu0 0
      %463 = vmatprep.subr.bf16.mxu0 0
      %464 = vmatpush2.bf16.msra.mxu0 0
      %465 = vmatprep.subr.bf16.mxu0 0
      %466 = vmatpush2.bf16.msra.mxu0 0
      %467 = vmatprep.subr.bf16.mxu0 0
      %468 = vmatpush2.bf16.msra.mxu0 0
      %469 = vmatprep.mubr.bf16.mxu0 0
      %470 = vmatmul.mubr.bf16.gmra.mxu0 %v425
      %v471 = vpop.f32.mrf.mxu0
      %v472 = vadd.f32 %v371, %v471
      %v473 = vpop.f32.mrf.mxu0
      %v474 = vadd.f32 %v371, %v473
      %v475 = vpop.f32.mrf.mxu0
      %v476 = vadd.f32 %v376, %v475
      %v477 = vpop.f32.mrf.mxu0
      %v478 = vadd.f32 %v376, %v477
      %479 = vdwg.mxu0
      %480 = vmatprep.subr.bf16.mxu0 0
      %481 = vmatpush1.bf16.msra.mxu0 0
      %482 = vmatprep.subr.bf16.mxu0 0
      %483 = vmatpush1.bf16.msra.mxu0 0
      %484 = vmatprep.subr.bf16.mxu0 0
      %485 = vmatpush1.bf16.msra.mxu0 0
      %486 = vmatprep.subr.bf16.mxu0 0
      %487 = vmatpush1.bf16.msra.mxu0 0
      %488 = vmatprep.subr.bf16.mxu0 0
      %489 = vmatpush1.bf16.msra.mxu0 0
      %490 = vmatprep.subr.bf16.mxu0 0
      %491 = vmatpush1.bf16.msra.mxu0 %v435
      %492 = vmatprep.subr.bf16.mxu0 0
      %493 = vmatpush1.bf16.msra.mxu0 %v413
      %494 = vmatprep.subr.bf16.mxu0 0
      %495 = vmatpush1.bf16.msra.mxu0 %v410
      %496 = vmatprep.subr.bf16.mxu0 0
      %497 = vmatpush2.bf16.msra.mxu0 0
      %498 = vmatprep.subr.bf16.mxu0 0
      %499 = vmatpush2.bf16.msra.mxu0 0
      %500 = vmatprep.subr.bf16.mxu0 0
      %501 = vmatpush2.bf16.msra.mxu0 0
      %502 = vmatprep.subr.bf16.mxu0 0
      %503 = vmatpush2.bf16.msra.mxu0 0
      %504 = vmatprep.subr.bf16.mxu0 0
      %505 = vmatpush2.bf16.msra.mxu0 0
      %506 = vmatprep.subr.bf16.mxu0 0
      %507 = vmatpush2.bf16.msra.mxu0 0
      %508 = vmatprep.subr.bf16.mxu0 0
      %509 = vmatpush2.bf16.msra.mxu0 0
      %510 = vmatprep.subr.bf16.mxu0 0
      %511 = vmatpush2.bf16.msra.mxu0 0
      %512 = vmatprep.mubr.bf16.mxu0 0
      %513 = vmatmul.mubr.bf16.gmra.mxu0 %v425
      %v514 = vpop.f32.mrf.mxu0
      %v515 = vadd.f32 %v371, %v514
      %v516 = vpop.f32.mrf.mxu0
      %v517 = vpop.f32.mrf.mxu0
      %v518 = vadd.f32 %v376, %v517
      %v519 = vpop.f32.mrf.mxu0
      %520 = vdwg.mxu0
      %v521 = vmax.f32 %v472, 0.0
      %v522 = vmax.f32 %v474, 0.0
      %v523 = vmax.f32 %v515, 0.0
      %v524 = vmax.f32 %v476, 0.0
      %v525 = vmax.f32 %v478, 0.0
      %v526 = vmax.f32 %v518, 0.0
      %v527 = vsub.f32 %v521, %v524
      %v528 = vsub.f32 %v522, %v525
      %v529 = vsub.f32 %v523, %v526
      %v530 = vsub.f32 %v524, %v521
      %v531 = vsub.f32 %v525, %v522
      %v532 = vsub.f32 %v526, %v523
      %v533 = vmul.f32 %v521, %v527
      %v534 = vmul.f32 %v522, %v528
      %v535 = vmul.f32 %v523, %v529
      %v536 = vmul.f32 %v524, %v530
      %v537 = vmul.f32 %v525, %v531
      %v538 = vmul.f32 %v526, %v532
      %v539 = vxor.u32 %v533, 2147483648
      %v540 = vxor.u32 %v534, 2147483648
      %v541 = vxor.u32 %v535, 2147483648
      %v542 = vxor.u32 %v536, 2147483648
      %v543 = vxor.u32 %v537, 2147483648
      %v544 = vxor.u32 %v538, 2147483648
      %v545 = vmul.f32 %v539, 1.442695
      %v546 = vpow.pop %v545
      %v547 = vmul.f32 %v540, 1.442695
      %v548 = vpow.pop %v547
      %v549 = vmul.f32 %v541, 1.442695
      %v550 = vpow.pop %v549
      %v551 = vmul.f32 %v542, 1.442695
      %v552 = vpow.pop %v551
      %v553 = vmul.f32 %v543, 1.442695
      %v554 = vpow.pop %v553
      %v555 = vmul.f32 %v544, 1.442695
      %v556 = vpow.pop %v555
      %v557 = vadd.f32 %v546, 1.0
      %v558 = vadd.f32 %v548, 1.0
      %v559 = vadd.f32 %v550, 1.0
      %v560 = vadd.f32 %v552, 1.0
      %v561 = vadd.f32 %v554, 1.0
      %v562 = vadd.f32 %v556, 1.0
      %v563 = vrcp.pop %v557
      %v564 = vmul.f32 1.0, %v563
      %v565 = vrcp.pop %v558
      %v566 = vmul.f32 1.0, %v565
      %v567 = vrcp.pop %v559
      %v568 = vmul.f32 1.0, %v567
      %v569 = vrcp.pop %v560
      %v570 = vmul.f32 1.0, %v569
      %v571 = vrcp.pop %v561
      %v572 = vmul.f32 1.0, %v571
      %v573 = vrcp.pop %v562
      %v574 = vmul.f32 1.0, %v573
      %v575 = vmul.f32 %v521, %v564
      %v576 = vmul.f32 %v522, %v566
      %v577 = vmul.f32 %v523, %v568
      %v578 = vmul.f32 %v524, %v570
      %v579 = vmul.f32 %v525, %v572
      %v580 = vmul.f32 %v526, %v574
      %581 = vst [vmem:[%s205] sm:$0xff] %v575
      %582 = vst [vmem:[%s205 + $0x8] sm:$0xff] %v576
      %583 = vst [vmem:[%s205 + $0x10] sm:$0xff] %v577
      %584 = vst [vmem:[%s210] sm:$0xff] %v578
      %585 = vst [vmem:[%s210 + $0x8] sm:$0xff] %v579
      %586 = vst [vmem:[%s210 + $0x10] sm:$0xff] %v580
      %p587 = scmp.lt.s32.totalorder %s16, 1
      %s588 = scalar_select %p587, %s16, 1
      %s589 = smul.addr %s588, 3
      %s590 = smul.addr %s589, 8
      %s591 = scalar_lea.vmem %s3, %s590
      %p592 = scmp.lt.s32.totalorder %s16, 1
      %s593 = scalar_select %p592, %s16, 1
      %s594 = smul.addr %s593, 3
      %s595 = smul.addr %s594, 8
      %s596 = scalar_lea.vmem %s4, %s595
      // Predicated region
      $region33: #{da_train_forward.1} parent=31 // pred_check
        %p597 = pneg %p102
      $region34: #{da_train_forward.1} parent=31 // pred_check_branch
        %599 = sbr.rel (%p597) target = $region36
      $region35: #{da_train_forward.1} parent=31 // pred_region
        _
      $region36: #{da_train_forward.1} parent=31 // pred_fallthru
        _
      // Predicated region
      $region37: #{da_train_forward.1} parent=31 // pred_check
        %p600 = pneg %p128
      $region38: #{da_train_forward.1} parent=31 // pred_check_branch
        %602 = sbr.rel (%p600) target = $region40
      $region39: #{da_train_forward.1} parent=31 // pred_region
        _
      $region40: #{da_train_forward.1} parent=31 // pred_fallthru
        _
    $region32: #{da_train_forward.1} parent=5 // pred_fallthru
      _
    %p603 = scmp.le.s32.totalorder 2, %s11
    // Predicated region
    $region41: #{da_train_forward.1} parent=5 // pred_check
      %p604 = pneg %p603
    $region42: #{da_train_forward.1} parent=5 // pred_check_branch
      %606 = sbr.rel (%p604) target = $region44
    $region43: #{da_train_forward.1} parent=5 // pred_region
      %s607 = ssub.s32 %s11, 2
      // Predicated region
      $region45: #{da_train_forward.1} parent=43 // pred_check
        %p608 = pneg %p108
      $region46: #{da_train_forward.1} parent=43 // pred_check_branch
        %610 = sbr.rel (%p608) target = $region48
      $region47: #{da_train_forward.1} parent=43 // pred_region
        %p611 = scmp.lt.s32.totalorder %s17, 1
        %s612 = scalar_select %p611, %s17, 1
        %s613 = smul.addr %s612, 3
        %s614 = smul.addr %s613, 8
        %s615 = scalar_lea.vmem %s3, %s614
      $region48: #{da_train_forward.1} parent=43 // pred_fallthru
        _
      // Predicated region
      $region49: #{da_train_forward.1} parent=43 // pred_check
        %p616 = pneg %p134
      $region50: #{da_train_forward.1} parent=43 // pred_check_branch
        %618 = sbr.rel (%p616) target = $region52
      $region51: #{da_train_forward.1} parent=43 // pred_region
        %p619 = scmp.lt.s32.totalorder %s17, 1
        %s620 = scalar_select %p619, %s17, 1
        %s621 = smul.addr %s620, 3
        %s622 = smul.addr %s621, 8
        %s623 = scalar_lea.vmem %s4, %s622
      $region52: #{da_train_forward.1} parent=43 // pred_fallthru
        _
    $region44: #{da_train_forward.1} parent=5 // pred_fallthru
      _
  $region6: #{da_train_forward.1} parent=0 // loop_footer
    %s15 = sadd.s32 1, %s11
  $region7: #{da_train_forward.1} parent=0 // loop_footer_branch
    %10 = sbr.rel target = $region3
  $region8: #{da_train_forward.1} parent=0 // loop_exit
    _

</llo_original>
